<compile_context>
chip_gen: v5e
topology: v5e:2x2
jax: 0.10.0
libtpu: 0.0.40
codegen_flags: <defaults>
</compile_context>

<pallas_src>
import functools

import jax
import jax.numpy as jnp
from jax.experimental import pallas as pl
from jax.experimental.pallas import tpu as pltpu

_MIB = 1024 * 1024


def _round_up(v, m):
    return ((v + m - 1) // m) * m


def _vmem_budget_bytes():
    """Usable VMEM budget for resident buffers (conservative, per TensorCore)."""
    cap = 64 * _MIB
    try:
        info = pltpu.get_tpu_info()
        cap = int(getattr(info, "vmem_capacity_bytes", cap)) or cap
    except Exception:
        pass
    cap = min(cap, 128 * _MIB)
    # 45% of reported capacity stays under 64 MiB/TC even if a v7x part
    # reports chip-level (2 x 64 MiB) VMEM, and leaves headroom for compiler
    # temporaries on v5e/v6e (128 MiB parts).
    return min(int(cap * 0.45), 56 * _MIB)


def _vmem_limit_bytes(needed):
    return int(min(max(needed + 8 * _MIB, 32 * _MIB), 64 * _MIB))


def build_norm_adj(edge_src, edge_dst, num_nodes, n_pad, edge_weight=None, *,
                   normalize=True, add_self_loops=True):
    """Dense gcn_norm adjacency: A[dst, src] = d(dst)^-1/2 * w * d(src)^-1/2,
    with self loops of weight 1 on the diagonal (PyG APPNP defaults)."""
    if edge_weight is None:
        w = jnp.ones(edge_src.shape[0], dtype=jnp.float32)
    else:
        w = edge_weight.astype(jnp.float32)
    if add_self_loops:
        # drop any existing self loops; they are re-added with weight 1 below
        w = jnp.where(edge_src == edge_dst, 0.0, w)
    if normalize:
        deg = jnp.zeros((num_nodes,), jnp.float32).at[edge_dst].add(w)
        if add_self_loops:
            deg = deg + 1.0
        dis = jnp.where(deg > 0.0, jax.lax.rsqrt(jnp.maximum(deg, 1e-12)), 0.0)
        w = dis[edge_src] * w * dis[edge_dst]
        loop_w = dis * dis
    else:
        loop_w = jnp.ones((num_nodes,), jnp.float32)
    a = jnp.zeros((n_pad, n_pad), jnp.float32).at[edge_dst, edge_src].add(w)
    if add_self_loops:
        idx = jnp.arange(num_nodes)
        a = a.at[idx, idx].add(loop_w)
    return a


# ---------------------------------------------------------------------------
# Fused path: all K hops in a single pallas_call, A_hat resident in VMEM.
# ---------------------------------------------------------------------------
def _appnp_fused_kernel(a_hbm, x_hbm, o_ref, a_vmem, h_ref, ax_ref, *, alpha, K):
    # a_hbm : [Np, Np] (adj dtype, HBM)   (1-alpha)-scaled normalized adjacency
    # x_hbm : [Np, Fp] (f32, HBM)         padded node features
    # o_ref : [Np, Fp] (f32, VMEM)        final output (written on last hop)
    # a_vmem: [Np, Np] scratch            A resident across all K hops
    # h_ref : [2, Np, Fp] scratch (f32)   ping-pong propagation state
    # ax_ref: [Np, Fp] scratch (f32)      alpha * x residual
    k = pl.program_id(0)

    @pl.when(k == 0)
    def _init():
        # One-time DMA of A and h_0 = x into VMEM (single-buffered, no refetch).
        pltpu.sync_copy(a_hbm, a_vmem)
        pltpu.sync_copy(x_hbm, h_ref.at[0])
        ax_ref[...] = alpha * h_ref[0]

    read0 = (k % 2) == 0
    not_last = k < (K - 1)

    h_cur = jnp.where(read0, h_ref[0], h_ref[1])          # f32 state
    h_in = h_cur.astype(a_vmem.dtype)                      # bf16 MXU operand
    nxt = jnp.dot(a_vmem[...], h_in,
                  preferred_element_type=jnp.float32) + ax_ref[...]

    @pl.when(jnp.logical_and(not_last, read0))
    def _store_slot1():
        h_ref[1] = nxt

    @pl.when(jnp.logical_and(not_last, jnp.logical_not(read0)))
    def _store_slot0():
        h_ref[0] = nxt

    @pl.when(k == K - 1)
    def _finalize():
        o_ref[...] = jnp.maximum(nxt, 0.0)   # fused ReLU; Dropout(p=0) = identity


def _appnp_fused(a_s, x_pad, *, alpha, K, vmem_limit):
    n_pad, f_pad = x_pad.shape
    adj_bytes = jnp.dtype(a_s.dtype).itemsize
    cost = pl.CostEstimate(
        flops=2 * K * n_pad * n_pad * f_pad,
        transcendentals=0,
        bytes_accessed=n_pad * n_pad * adj_bytes + 2 * n_pad * f_pad * 4,
    )
    return pl.pallas_call(
        functools.partial(_appnp_fused_kernel, alpha=alpha, K=K),
        out_shape=jax.ShapeDtypeStruct((n_pad, f_pad), jnp.float32),
        grid_spec=pltpu.PrefetchScalarGridSpec(
            num_scalar_prefetch=0,
            grid=(K,),
            in_specs=[
                pl.BlockSpec(memory_space=pl.ANY),   # A stays in HBM; manual DMA
                pl.BlockSpec(memory_space=pl.ANY),   # x stays in HBM; manual DMA
            ],
            out_specs=pl.BlockSpec((n_pad, f_pad), lambda k: (0, 0)),
            scratch_shapes=[
                pltpu.VMEM((n_pad, n_pad), a_s.dtype),
                pltpu.VMEM((2, n_pad, f_pad), jnp.float32),
                pltpu.VMEM((n_pad, f_pad), jnp.float32),
            ],
        ),
        compiler_params=pltpu.CompilerParams(
            dimension_semantics=("arbitrary",),      # hops are sequential
            vmem_limit_bytes=vmem_limit,
        ),
        cost_estimate=cost,
    )(a_s, x_pad)


# ---------------------------------------------------------------------------
# Streaming fallback: one pallas_call per hop, A row tiles streamed from HBM.
# ---------------------------------------------------------------------------
def _appnp_hop_kernel(a_ref, h_ref, ax_ref, o_ref, *, last):
    # a_ref : [TM, Np] (adj dtype)  row tile of the (1-alpha)-scaled adjacency
    # h_ref : [Np, Fp] (f32)        full current propagation state
    # ax_ref: [TM, Fp] (f32)        row tile of alpha * x
    # o_ref : [TM, Fp] (f32)        next state / final output
    h_in = h_ref[...].astype(a_ref.dtype)
    out = jnp.dot(a_ref[...], h_in,
                  preferred_element_type=jnp.float32) + ax_ref[...]
    if last:
        out = jnp.maximum(out, 0.0)   # fused ReLU on the final hop
    o_ref[...] = out


def _pick_stream_tile(n_pad, f_pad, adj_bytes, budget):
    """Largest row tile of A (a divisor of n_pad) that fits the VMEM budget
    while keeping >=4 row tiles when possible (v7x megacore / DMA overlap)."""
    def footprint(tm):
        return (2 * tm * n_pad * adj_bytes      # double-buffered A row tile
                + 2 * n_pad * f_pad * 4         # resident f32 h
                + 2 * tm * f_pad * 4            # ax row tile
                + 2 * tm * f_pad * 4)           # out row tile
    tm = 128
    for cand in (512, 256):
        if n_pad % cand:
            continue
        if n_pad // cand < 4:
            continue
        if footprint(cand) <= budget:
            tm = cand
            break
    return tm, footprint(tm)


def _appnp_hop(a_s, h, ax, *, last, tm, vmem_limit):
    n_pad = a_s.shape[0]
    f_pad = h.shape[1]
    adj_bytes = jnp.dtype(a_s.dtype).itemsize
    cost = pl.CostEstimate(
        flops=2 * n_pad * n_pad * f_pad,
        transcendentals=0,
        bytes_accessed=n_pad * n_pad * adj_bytes + 3 * n_pad * f_pad * 4,
    )
    # TODO(synk): for very large N where resident h no longer fits VMEM, add a
    # contraction-axis grid dimension with an f32 accumulator instead of
    # requiring the full (Np, Fp) h block; also pl.Buffered(1) on the constant
    # h BlockSpec would halve its footprint.
    return pl.pallas_call(
        functools.partial(_appnp_hop_kernel, last=last),
        out_shape=jax.ShapeDtypeStruct((n_pad, f_pad), jnp.float32),
        grid_spec=pltpu.PrefetchScalarGridSpec(
            num_scalar_prefetch=0,
            grid=(n_pad // tm,),
            in_specs=[
                pl.BlockSpec((tm, n_pad), lambda i: (i, 0)),      # A row tile
                pl.BlockSpec((n_pad, f_pad), lambda i: (0, 0)),   # whole h
                pl.BlockSpec((tm, f_pad), lambda i: (i, 0)),      # alpha*x tile
            ],
            out_specs=pl.BlockSpec((tm, f_pad), lambda i: (i, 0)),
        ),
        compiler_params=pltpu.CompilerParams(
            dimension_semantics=("parallel",),
            vmem_limit_bytes=vmem_limit,
        ),
        cost_estimate=cost,
    )(a_s, h, ax)


def _appnp_stream(a_s, x_pad, *, alpha, K, budget):
    n_pad, f_pad = x_pad.shape
    adj_bytes = jnp.dtype(a_s.dtype).itemsize
    tm, footprint = _pick_stream_tile(n_pad, f_pad, adj_bytes, budget)
    vmem_limit = _vmem_limit_bytes(footprint)
    ax = alpha * x_pad
    h = x_pad                              # h stays f32 in HBM between hops
    for k in range(K):
        h = _appnp_hop(a_s, h, ax, last=(k == K - 1), tm=tm,
                       vmem_limit=vmem_limit)
    return h


# ---------------------------------------------------------------------------
# Public forward + pure-JAX references
# ---------------------------------------------------------------------------
def appnp_forward(x, edge_index, edge_weight=None, *, K=10, alpha=0.1,
                  normalize=True, add_self_loops=True,
                  adj_dtype=jnp.bfloat16, force_stream=False):
    """APPNP propagation + ReLU (dropout p=0 / eval mode -> identity)."""
    n, f = x.shape
    x_f32 = x.astype(jnp.float32)
    if K == 0:
        return jnp.maximum(x_f32, 0.0)

    f_pad = _round_up(f, 128)              # lane-dense output last dim
    n_pad = _round_up(max(n, 8), 128)      # no TM-multiple inflation of N

    # TODO(synk): the dense N x N normalized adjacency is built in plain JAX;
    # a block-sparse / scalar-prefetched-gather formulation would avoid
    # streaming empty tiles for large sparse graphs.
    a_hat = build_norm_adj(edge_index[0], edge_index[1], n, n_pad, edge_weight,
                           normalize=normalize, add_self_loops=add_self_loops)
    # Fold (1 - alpha) into A once; the hop body becomes a pure dot + add.
    # TODO(synk): quantize A to int8 (v5e/v6e) or fp8-e4m3 (v7x) gated on
    # pltpu.get_tpu_info() chip version to halve A bytes / VMEM footprint.
    a_s = ((1.0 - alpha) * a_hat).astype(adj_dtype)
    x_pad = jnp.zeros((n_pad, f_pad), jnp.float32).at[:n, :f].set(x_f32)

    adj_bytes = jnp.dtype(adj_dtype).itemsize
    budget = _vmem_budget_bytes()
    fused_need = (n_pad * n_pad * adj_bytes       # resident A (single-buffered)
                  + 3 * n_pad * f_pad * 4         # h ping-pong (2) + alpha*x
                  + 2 * n_pad * f_pad * 4)        # double-buffered output block
    if (not force_stream) and fused_need <= budget:
        out = _appnp_fused(a_s, x_pad, alpha=alpha, K=K,
                           vmem_limit=_vmem_limit_bytes(fused_need))
    else:
        out = _appnp_stream(a_s, x_pad, alpha=alpha, K=K, budget=budget)
    return out[:n, :f]


def appnp_reference(x, edge_index, edge_weight=None, *, K=10, alpha=0.1,
                    normalize=True, add_self_loops=True,
                    adj_dtype=jnp.float32):
    """Pure-JAX reference. adj_dtype=f32 -> exact APPNP semantics;
    adj_dtype=bf16 -> same mixed-precision scheme as the kernels
    (bf16 A, f32 state, bf16 matmul input, f32 accumulate)."""
    n = x.shape[0]
    a = build_norm_adj(edge_index[0], edge_index[1], n, n, edge_weight,
                       normalize=normalize, add_self_loops=add_self_loops)
    x_f32 = x.astype(jnp.float32)
    if adj_dtype == jnp.float32:
        h = x_f32
        for _ in range(K):
            h = (1.0 - alpha) * (a @ h) + alpha * x_f32
        return jnp.maximum(h, 0.0)
    a_s = ((1.0 - alpha) * a).astype(adj_dtype)
    ax = alpha * x_f32
    h = x_f32
    for _ in range(K):
        h = jnp.dot(a_s, h.astype(adj_dtype),
                    preferred_element_type=jnp.float32) + ax
    return jnp.maximum(h, 0.0)


if __name__ == "__main__":
    key = jax.random.PRNGKey(0)
    k_x, k_s, k_d = jax.random.split(key, 3)

    N, F, E = 16, 8, 48
    K_HOPS, ALPHA = 10, 0.1

    x = jax.random.normal(k_x, (N, F), dtype=jnp.float32)
    src = jax.random.randint(k_s, (E,), 0, N, dtype=jnp.int32)
    # guarantee no self loops in the synthetic graph (they are added by APPNP)
    dst = (src + 1 + jax.random.randint(k_d, (E,), 0, N - 1,
                                        dtype=jnp.int32)) % N
    edge_index = jnp.stack([src, dst], axis=0)

    fwd = jax.jit(appnp_forward,
                  static_argnames=("K", "alpha", "normalize", "add_self_loops",
                                   "adj_dtype", "force_stream"))

    # fused single-pallas_call path (A resident in VMEM across all K hops)
    out_fused = jax.block_until_ready(fwd(x, edge_index, K=K_HOPS, alpha=ALPHA))
    # streaming fallback path (also exercised to keep it compiling/working)
    out_stream = jax.block_until_ready(
        fwd(x, edge_index, K=K_HOPS, alpha=ALPHA, force_stream=True))
    assert out_fused.shape == (N, F)
    assert out_stream.shape == (N, F)

    # tight check vs a pure-JAX reference using the same mixed-precision scheme
    ref_mixed = appnp_reference(x, edge_index, K=K_HOPS, alpha=ALPHA,
                                adj_dtype=jnp.bfloat16)
    assert jnp.allclose(out_fused, ref_mixed, atol=2e-2, rtol=2e-2), \
        "fused kernel mismatch (mixed ref)"
    assert jnp.allclose(out_stream, ref_mixed, atol=2e-2, rtol=2e-2), \
        "streaming kernel mismatch (mixed ref)"

    # looser check vs exact f32 APPNP semantics (bf16 adjacency rounding)
    ref_f32 = appnp_reference(x, edge_index, K=K_HOPS, alpha=ALPHA,
                              adj_dtype=jnp.float32)
    assert jnp.allclose(out_fused, ref_f32, atol=7e-2, rtol=7e-2), \
        "fused kernel mismatch (f32 ref)"

    # TODO(synk): nn.Dropout / APPNP edge-dropout with p>0 in training mode is
    # not implemented (module defaults are p=0.0 / eval mode -> identity).
    print("KERNEL_OK")
</pallas_src>

<mosaic_0001>
module attributes {stable_mosaic.version = 11 : i64} {
  func.func @_appnp_fused_kernel(%arg0: i32, %arg1: memref<128x128xbf16, #tpu.memory_space<any>>, %arg2: memref<128x128xf32, #tpu.memory_space<any>>, %arg3: memref<128x128xf32, #tpu.memory_space<vmem>>, %arg4: memref<128x128xbf16, #tpu.memory_space<vmem>>, %arg5: memref<2x128x128xf32, #tpu.memory_space<vmem>>, %arg6: memref<128x128xf32, #tpu.memory_space<vmem>>) attributes {dimension_semantics = [#tpu.dimension_semantics<arbitrary>], iteration_bounds = array<i64: 10>, scalar_prefetch = 0 : i64, scratch_operands = 3 : i64, tpu.core_type = #tpu.core_type<tc>, window_params = [{}, {}, {pipeline_mode = #tpu.pipeline_mode<synchronous>, transform_indices = @transform_2, window_bounds = array<i64: 128, 128>}]} {
    %c0_i32 = arith.constant 0 : i32
    %0 = arith.cmpi eq, %arg0, %c0_i32 : i32
    %1 = arith.extui %0 : i1 to i32
    %c0_i32_0 = arith.constant 0 : i32
    %2 = arith.cmpi ne, %1, %c0_i32_0 : i32
    scf.if %2 {
      "tpu.region"() ({
        %40 = tpu.sem_alloc : memref<!tpu.dma_semaphore, #tpu.memory_space<semaphore_mem>>
        tpu.enqueue_dma source(%arg1 : memref<128x128xbf16, #tpu.memory_space<any>>) target(%arg4 : memref<128x128xbf16, #tpu.memory_space<vmem>>) target_semaphore(%40 : memref<!tpu.dma_semaphore, #tpu.memory_space<semaphore_mem>>)
        tpu.wait_dma2 semaphore(%40 : memref<!tpu.dma_semaphore, #tpu.memory_space<semaphore_mem>>) src(%arg1 : memref<128x128xbf16, #tpu.memory_space<any>>) dst(%arg4 : memref<128x128xbf16, #tpu.memory_space<vmem>>)
        tpu.yield
      }) : () -> ()
      %c0_i32_18 = arith.constant 0 : i32
      "tpu.region"() ({
        %40 = tpu.sem_alloc : memref<!tpu.dma_semaphore, #tpu.memory_space<semaphore_mem>>
        %c0_i32_25 = arith.constant 0 : i32
        %c0_i32_26 = arith.constant 0 : i32
        %41 = tpu.memref_slice %arg5[%c0_i32_18, %c0_i32_25, %c0_i32_26] : memref<2x128x128xf32, #tpu.memory_space<vmem>> -> memref<1x128x128xf32, #tpu.memory_space<vmem>>
        %42 = tpu.memref_squeeze %41 : memref<1x128x128xf32, #tpu.memory_space<vmem>> -> memref<128x128xf32, #tpu.memory_space<vmem>>
        tpu.enqueue_dma source(%arg2 : memref<128x128xf32, #tpu.memory_space<any>>) target(%42 : memref<128x128xf32, #tpu.memory_space<vmem>>) target_semaphore(%40 : memref<!tpu.dma_semaphore, #tpu.memory_space<semaphore_mem>>)
        %c0_i32_27 = arith.constant 0 : i32
        %c0_i32_28 = arith.constant 0 : i32
        %43 = tpu.memref_slice %arg5[%c0_i32_18, %c0_i32_27, %c0_i32_28] : memref<2x128x128xf32, #tpu.memory_space<vmem>> -> memref<1x128x128xf32, #tpu.memory_space<vmem>>
        %44 = tpu.memref_squeeze %43 : memref<1x128x128xf32, #tpu.memory_space<vmem>> -> memref<128x128xf32, #tpu.memory_space<vmem>>
        tpu.wait_dma2 semaphore(%40 : memref<!tpu.dma_semaphore, #tpu.memory_space<semaphore_mem>>) src(%arg2 : memref<128x128xf32, #tpu.memory_space<any>>) dst(%44 : memref<128x128xf32, #tpu.memory_space<vmem>>)
        tpu.yield
      }) : () -> ()
      %c0_19 = arith.constant 0 : index
      %c0_20 = arith.constant 0 : index
      %c0_21 = arith.constant 0 : index
      %35 = vector.load %arg5[%c0_19, %c0_20, %c0_21] : memref<2x128x128xf32, #tpu.memory_space<vmem>>, vector<1x128x128xf32>
      %36 = vector.shape_cast %35 : vector<1x128x128xf32> to vector<128x128xf32>
      %cst_22 = arith.constant 1.000000e-01 : f32
      %37 = vector.broadcast %cst_22 : f32 to vector<128x128xf32>
      %38 = arith.mulf %37, %36 : vector<128x128xf32>
      %c0_23 = arith.constant 0 : index
      %c0_24 = arith.constant 0 : index
      %39 = vector.load %arg6[%c0_23, %c0_24] : memref<128x128xf32, #tpu.memory_space<vmem>>, vector<128x128xf32>
      tpu.vector_store %arg6[%c0_23, %c0_24], %38 {strides = array<i32>} : memref<128x128xf32, #tpu.memory_space<vmem>>, vector<128x128xf32>,
    } else {
    }
    %c2_i32 = arith.constant 2 : i32
    %c0_i32_1 = arith.constant 0 : i32
    %3 = arith.cmpi eq, %c2_i32, %c0_i32_1 : i32
    %c1_i32 = arith.constant 1 : i32
    %4 = arith.select %3, %c1_i32, %c2_i32 : i32
    %5 = arith.remsi %arg0, %4 : i32
    %c0_i32_2 = arith.constant 0 : i32
    %6 = arith.cmpi ne, %5, %c0_i32_2 : i32
    %c0_i32_3 = arith.constant 0 : i32
    %7 = arith.cmpi slt, %5, %c0_i32_3 : i32
    %c0_i32_4 = arith.constant 0 : i32
    %8 = arith.cmpi slt, %4, %c0_i32_4 : i32
    %9 = arith.xori %7, %8 : i1
    %10 = arith.andi %9, %6 : i1
    %11 = arith.addi %5, %4 : i32
    %12 = arith.select %10, %11, %5 : i32
    %c0_i32_5 = arith.constant 0 : i32
    %13 = arith.cmpi eq, %12, %c0_i32_5 : i32
    %c9_i32 = arith.constant 9 : i32
    %14 = arith.cmpi slt, %arg0, %c9_i32 : i32
    %c0 = arith.constant 0 : index
    %c0_6 = arith.constant 0 : index
    %c0_7 = arith.constant 0 : index
    %15 = vector.load %arg5[%c0, %c0_6, %c0_7] : memref<2x128x128xf32, #tpu.memory_space<vmem>>, vector<1x128x128xf32>
    %16 = vector.shape_cast %15 : vector<1x128x128xf32> to vector<128x128xf32>
    %c1 = arith.constant 1 : index
    %c0_8 = arith.constant 0 : index
    %c0_9 = arith.constant 0 : index
    %17 = vector.load %arg5[%c1, %c0_8, %c0_9] : memref<2x128x128xf32, #tpu.memory_space<vmem>>, vector<1x128x128xf32>
    %18 = vector.shape_cast %17 : vector<1x128x128xf32> to vector<128x128xf32>
    %19 = arith.select %13, %16, %18 : vector<128x128xf32>
    %20 = arith.truncf %19 : vector<128x128xf32> to vector<128x128xbf16>
    %c0_10 = arith.constant 0 : index
    %c0_11 = arith.constant 0 : index
    %21 = vector.load %arg4[%c0_10, %c0_11] : memref<128x128xbf16, #tpu.memory_space<vmem>>, vector<128x128xbf16>
    %cst = arith.constant dense<0.000000e+00> : vector<128x128xf32>
    %22 = tpu.matmul %21, %20, %cst {dimension_numbers = #tpu.dot_dimension_numbers<[1], [0], [0], [1], [0, 0, 1, 1], [], []>} : vector<128x128xbf16>, vector<128x128xbf16>, vector<128x128xf32> -> vector<128x128xf32>
    %c0_12 = arith.constant 0 : index
    %c0_13 = arith.constant 0 : index
    %23 = vector.load %arg6[%c0_12, %c0_13] : memref<128x128xf32, #tpu.memory_space<vmem>>, vector<128x128xf32>
    %24 = arith.addf %22, %23 : vector<128x128xf32>
    %25 = arith.andi %14, %13 : i1
    %26 = arith.extui %25 : i1 to i32
    %c0_i32_14 = arith.constant 0 : i32
    %27 = arith.cmpi ne, %26, %c0_i32_14 : i32
    scf.if %27 {
      %c1_18 = arith.constant 1 : index
      %c0_19 = arith.constant 0 : index
      %c0_20 = arith.constant 0 : index
      %35 = vector.load %arg5[%c1_18, %c0_19, %c0_20] : memref<2x128x128xf32, #tpu.memory_space<vmem>>, vector<1x128x128xf32>
      %36 = vector.shape_cast %35 : vector<1x128x128xf32> to vector<128x128xf32>
      %37 = vector.shape_cast %24 : vector<128x128xf32> to vector<1x128x128xf32>
      tpu.vector_store %arg5[%c1_18, %c0_19, %c0_20], %37 {strides = array<i32>} : memref<2x128x128xf32, #tpu.memory_space<vmem>>, vector<1x128x128xf32>,
    } else {
    }
    %true = arith.constant true
    %28 = arith.xori %13, %true : i1
    %29 = arith.andi %14, %28 : i1
    %30 = arith.extui %29 : i1 to i32
    %c0_i32_15 = arith.constant 0 : i32
    %31 = arith.cmpi ne, %30, %c0_i32_15 : i32
    scf.if %31 {
      %c0_18 = arith.constant 0 : index
      %c0_19 = arith.constant 0 : index
      %c0_20 = arith.constant 0 : index
      %35 = vector.load %arg5[%c0_18, %c0_19, %c0_20] : memref<2x128x128xf32, #tpu.memory_space<vmem>>, vector<1x128x128xf32>
      %36 = vector.shape_cast %35 : vector<1x128x128xf32> to vector<128x128xf32>
      %37 = vector.shape_cast %24 : vector<128x128xf32> to vector<1x128x128xf32>
      tpu.vector_store %arg5[%c0_18, %c0_19, %c0_20], %37 {strides = array<i32>} : memref<2x128x128xf32, #tpu.memory_space<vmem>>, vector<1x128x128xf32>,
    } else {
    }
    %c9_i32_16 = arith.constant 9 : i32
    %32 = arith.cmpi eq, %arg0, %c9_i32_16 : i32
    %33 = arith.extui %32 : i1 to i32
    %c0_i32_17 = arith.constant 0 : i32
    %34 = arith.cmpi ne, %33, %c0_i32_17 : i32
    scf.if %34 {
      %cst_18 = arith.constant 0.000000e+00 : f32
      %35 = vector.broadcast %cst_18 : f32 to vector<128x128xf32>
      %36 = arith.maximumf %24, %35 : vector<128x128xf32>
      %c0_19 = arith.constant 0 : index
      %c0_20 = arith.constant 0 : index
      %37 = vector.load %arg3[%c0_19, %c0_20] : memref<128x128xf32, #tpu.memory_space<vmem>>, vector<128x128xf32>
      tpu.vector_store %arg3[%c0_19, %c0_20], %36 {strides = array<i32>} : memref<128x128xf32, #tpu.memory_space<vmem>>, vector<128x128xf32>,
    } else {
    }
    return
  }
  func.func @transform_2(%arg0: i32) -> (i32, i32) {
    %c0_i32 = arith.constant 0 : i32
    %c0_i32_0 = arith.constant 0 : i32
    %c0_i32_1 = arith.constant 0 : i32
    return %c0_i32, %c0_i32_0 : i32, i32
  }
}

</mosaic_0001>

<llo_original>
// kernel: appnp_forward.1
$region0: #{appnp_forward.1}
  #allocation0 [shape = 'u32[]', space=smem, size = 0x4, offset = 0x4, fixed_abs, tag = 'smem constant byte address 0x4 - core index']
  #allocation1 [shape = 'u32[72,128]{1,0:T(1,128)}', space=vmem, size = 0x9000, scoped, tag = 'internal scratch']
  #allocation2 [shape = 'bf16[128,128]{1,0:T(8,128)(2,1)}', space=vmem, size = 0x8000, scoped, tag = 'scratch operand']
  #allocation3 [shape = 'f32[2,128,128]{2,1,0:T(8,128)}', space=vmem, size = 0x20000, scoped, tag = 'scratch operand']
  #allocation4 [shape = 'f32[128,128]{1,0:T(8,128)}', space=vmem, size = 0x10000, scoped, tag = 'scratch operand']
  #allocation6 [shape = 's32[]', space=sflag, size = 0x4, offset = 0, fixed_abs, tag = 'sflag constant byte address 0x0 - dummy sync flag']
  #allocation8 [shape = 's32[]', space=sflag, size = 0x4, offset = 0, fixed_abs, tag = 'sflag constant byte address 0x0 - dummy sync flag']
  %s0 = inlined_call_operand.vmem [shape: bf16[128,128], index: 0, kind: input, shape index: {}]
  %s1 = inlined_call_operand.vmem [shape: f32[128,128], index: 1, kind: input, shape index: {}]
  %s2 = inlined_call_operand.vmem [shape: f32[128,128], index: 2, kind: output, shape index: {}]
  %s3 = sld [smem:[#allocation0]]
  $region81: #{appnp_forward.1} parent=0
    _
  %s5 = ssub.s32 1, %s3
  %s6 = scalar_select 0, %s5, %s3
  loop: start=0, step=1, limit=11
  $region2: #{appnp_forward.1} parent=0 // loop_pre_header
    _
  $region3: #{appnp_forward.1} parent=0 // loop_header
    %s8 = sphi 0, %s12
    %p9 = scmp.ge.s32.totalorder %s8, 11
    %s15 = sphi 0, %s15
    %s17 = sphi 0, %s15
    %s25 = sphi 0, %s17
  $region4: #{appnp_forward.1} parent=0 // loop_header_branch
    %11 = sbr.rel (%p9) target = $region8
  $region5: #{appnp_forward.1} parent=0 // loop_body
    %s13 = ssub.s32 %s8, 1
    %s14 = sadd.s32 %s8, 1
    %s16 = sadd.s32 %s15, 1
    %p18 = scmp.eq.s32.totalorder %s8, 9
    %p19 = scmp.ne.s32.totalorder %s15, %s17
    %p20 = scmp.eq.s32.totalorder %s8, 0
    %p21 = por %p19, %p20
    %p22 = scmp.ne.s32.totalorder %s15, %s17
    %p23 = scmp.eq.s32.totalorder %s13, 9
    %p24 = por %p22, %p23
    %p26 = scmp.ne.s32.totalorder %s17, %s25
    %p27 = scmp.eq.s32.totalorder %s13, 0
    %p28 = por %p26, %p27
    %p29 = scmp.lt.s32.totalorder %s8, 10
    // Predicated region
    $region9: #{appnp_forward.1} parent=5 // pred_check
      %p30 = pneg %p29
    $region10: #{appnp_forward.1} parent=5 // pred_check_branch
      %32 = sbr.rel (%p30) target = $region12
    $region11: #{appnp_forward.1} parent=5 // pred_region
      %p33 = pneg %p21
      %p34 = pneg %p18
      %p35 = scmp.eq.s32.totalorder %s8, 0
      // Predicated region
      $region13: #{appnp_forward.1} parent=11 // pred_check
        %p36 = pneg %p35
      $region14: #{appnp_forward.1} parent=11 // pred_check_branch
        %38 = sbr.rel (%p36) target = $region16
      $region15: #{appnp_forward.1} parent=11 // pred_region
        $region17: #{appnp_forward.1} parent=15
          #allocation5 [shape = 's32[1]{0}', space=sflag, size = 0x4, scoped, tag = 'scoped memory for appnp_forward.1']
          // Predicated region
          $region18: #{appnp_forward.1} parent=17 // pred_check
            _
          $region19: #{appnp_forward.1} parent=17 // pred_check_branch
            %40 = sbr.rel (0) target = $region21
          $region20: #{appnp_forward.1} parent=17 // pred_region
            loop: start=0, step=1, limit=1
            $region22: #{appnp_forward.1} parent=20 // loop_pre_header
              _
            $region23: #{appnp_forward.1} parent=20 // loop_header
              %s42 = sphi 0, %s46
              %p43 = scmp.ge.s32.totalorder %s42, 1
              %s47 = sphi %s0, %s0
              %s48 = sphi [#allocation2], [#allocation2]
            $region24: #{appnp_forward.1} parent=20 // loop_header_branch
              %45 = sbr.rel (%p43) target = $region28
            $region25: #{appnp_forward.1} parent=20 // loop_body
              %v49 = vld [vmem:[%s47] sm:$0xff]
              %50 = vst [vmem:[%s48] sm:$0xff] %v49
              %v51 = vld [vmem:[%s47 + $0x8] sm:$0xff]
              %52 = vst [vmem:[%s48 + $0x8] sm:$0xff] %v51
              %v53 = vld [vmem:[%s47 + $0x10] sm:$0xff]
              %54 = vst [vmem:[%s48 + $0x10] sm:$0xff] %v53
              %v55 = vld [vmem:[%s47 + $0x18] sm:$0xff]
              %56 = vst [vmem:[%s48 + $0x18] sm:$0xff] %v55
              %v57 = vld [vmem:[%s47 + $0x20] sm:$0xff]
              %58 = vst [vmem:[%s48 + $0x20] sm:$0xff] %v57
              %v59 = vld [vmem:[%s47 + $0x28] sm:$0xff]
              %60 = vst [vmem:[%s48 + $0x28] sm:$0xff] %v59
              %v61 = vld [vmem:[%s47 + $0x30] sm:$0xff]
              %62 = vst [vmem:[%s48 + $0x30] sm:$0xff] %v61
              %v63 = vld [vmem:[%s47 + $0x38] sm:$0xff]
              %64 = vst [vmem:[%s48 + $0x38] sm:$0xff] %v63
            $region26: #{appnp_forward.1} parent=20 // loop_footer
              %s46 = sadd.s32 1, %s42
            $region27: #{appnp_forward.1} parent=20 // loop_footer_branch
              %41 = sbr.rel target = $region23
            $region28: #{appnp_forward.1} parent=20 // loop_exit
              _
          $region21: #{appnp_forward.1} parent=17 // pred_fallthru
            _
          // Predicated region
          $region29: #{appnp_forward.1} parent=17 // pred_check
            _
          $region30: #{appnp_forward.1} parent=17 // pred_check_branch
            %66 = sbr.rel target = $region32
          $region31: #{appnp_forward.1} parent=17 // pred_region
            _
          $region32: #{appnp_forward.1} parent=17 // pred_fallthru
            _
          // Predicated region
          $region33: #{appnp_forward.1} parent=17 // pred_check
            _
          $region34: #{appnp_forward.1} parent=17 // pred_check_branch
            %69 = sbr.rel (0) target = $region36
          $region35: #{appnp_forward.1} parent=17 // pred_region
            %70 = vsyncadd [#allocation5], 1024
          $region36: #{appnp_forward.1} parent=17 // pred_fallthru
            _
          %s71 = smul.u32 4, 16
          %s72 = smul.u32 %s71, 1
          %s73 = sshll.u32 %s72, 4
          %74 = dma.done [#allocation5], %s73
        $region37: #{appnp_forward.1} parent=15
          #allocation7 [shape = 's32[1]{0}', space=sflag, size = 0x4, scoped, tag = 'scoped memory for appnp_forward.1']
          // Predicated region
          $region38: #{appnp_forward.1} parent=37 // pred_check
            _
          $region39: #{appnp_forward.1} parent=37 // pred_check_branch
            %76 = sbr.rel (0) target = $region41
          $region40: #{appnp_forward.1} parent=37 // pred_region
            loop: start=0, step=1, limit=1
            $region42: #{appnp_forward.1} parent=40 // loop_pre_header
              _
            $region43: #{appnp_forward.1} parent=40 // loop_header
              %s78 = sphi 0, %s82
              %p79 = scmp.ge.s32.totalorder %s78, 1
              %s83 = sphi %s1, %s1
              %s84 = sphi [#allocation3], [#allocation3]
            $region44: #{appnp_forward.1} parent=40 // loop_header_branch
              %81 = sbr.rel (%p79) target = $region48
            $region45: #{appnp_forward.1} parent=40 // loop_body
              %v85 = vld [vmem:[%s83] sm:$0xff]
              %86 = vst [vmem:[%s84] sm:$0xff] %v85
              %v87 = vld [vmem:[%s83 + $0x8] sm:$0xff]
              %88 = vst [vmem:[%s84 + $0x8] sm:$0xff] %v87
              %v89 = vld [vmem:[%s83 + $0x10] sm:$0xff]
              %90 = vst [vmem:[%s84 + $0x10] sm:$0xff] %v89
              %v91 = vld [vmem:[%s83 + $0x18] sm:$0xff]
              %92 = vst [vmem:[%s84 + $0x18] sm:$0xff] %v91
              %v93 = vld [vmem:[%s83 + $0x20] sm:$0xff]
              %94 = vst [vmem:[%s84 + $0x20] sm:$0xff] %v93
              %v95 = vld [vmem:[%s83 + $0x28] sm:$0xff]
              %96 = vst [vmem:[%s84 + $0x28] sm:$0xff] %v95
              %v97 = vld [vmem:[%s83 + $0x30] sm:$0xff]
              %98 = vst [vmem:[%s84 + $0x30] sm:$0xff] %v97
              %v99 = vld [vmem:[%s83 + $0x38] sm:$0xff]
              %100 = vst [vmem:[%s84 + $0x38] sm:$0xff] %v99
              %v101 = vld [vmem:[%s83 + $0x40] sm:$0xff]
              %102 = vst [vmem:[%s84 + $0x40] sm:$0xff] %v101
              %v103 = vld [vmem:[%s83 + $0x48] sm:$0xff]
              %104 = vst [vmem:[%s84 + $0x48] sm:$0xff] %v103
              %v105 = vld [vmem:[%s83 + $0x50] sm:$0xff]
              %106 = vst [vmem:[%s84 + $0x50] sm:$0xff] %v105
              %v107 = vld [vmem:[%s83 + $0x58] sm:$0xff]
              %108 = vst [vmem:[%s84 + $0x58] sm:$0xff] %v107
              %v109 = vld [vmem:[%s83 + $0x60] sm:$0xff]
              %110 = vst [vmem:[%s84 + $0x60] sm:$0xff] %v109
              %v111 = vld [vmem:[%s83 + $0x68] sm:$0xff]
              %112 = vst [vmem:[%s84 + $0x68] sm:$0xff] %v111
              %v113 = vld [vmem:[%s83 + $0x70] sm:$0xff]
              %114 = vst [vmem:[%s84 + $0x70] sm:$0xff] %v113
              %v115 = vld [vmem:[%s83 + $0x78] sm:$0xff]
              %116 = vst [vmem:[%s84 + $0x78] sm:$0xff] %v115
            $region46: #{appnp_forward.1} parent=40 // loop_footer
              %s82 = sadd.s32 1, %s78
            $region47: #{appnp_forward.1} parent=40 // loop_footer_branch
              %77 = sbr.rel target = $region43
            $region48: #{appnp_forward.1} parent=40 // loop_exit
              _
          $region41: #{appnp_forward.1} parent=37 // pred_fallthru
            _
          // Predicated region
          $region49: #{appnp_forward.1} parent=37 // pred_check
            _
          $region50: #{appnp_forward.1} parent=37 // pred_check_branch
            %118 = sbr.rel target = $region52
          $region51: #{appnp_forward.1} parent=37 // pred_region
            _
          $region52: #{appnp_forward.1} parent=37 // pred_fallthru
            _
          // Predicated region
          $region53: #{appnp_forward.1} parent=37 // pred_check
            _
          $region54: #{appnp_forward.1} parent=37 // pred_check_branch
            %121 = sbr.rel (0) target = $region56
          $region55: #{appnp_forward.1} parent=37 // pred_region
            %122 = vsyncadd [#allocation7], 2048
          $region56: #{appnp_forward.1} parent=37 // pred_fallthru
            _
          %s123 = smul.u32 128, 1
          %s124 = sshll.u32 %s123, 4
          %125 = dma.done [#allocation7], %s124
        %v126 = vld [vmem:[#allocation3] sm:$0xff]
        %v127 = vld [vmem:[#allocation3 + $0x8] sm:$0xff]
        %v128 = vld [vmem:[#allocation3 + $0x10] sm:$0xff]
        %v129 = vld [vmem:[#allocation3 + $0x18] sm:$0xff]
        %v130 = vld [vmem:[#allocation3 + $0x20] sm:$0xff]
        %v131 = vld [vmem:[#allocation3 + $0x28] sm:$0xff]
        %v132 = vld [vmem:[#allocation3 + $0x30] sm:$0xff]
        %v133 = vld [vmem:[#allocation3 + $0x38] sm:$0xff]
        %v134 = vld [vmem:[#allocation3 + $0x40] sm:$0xff]
        %v135 = vld [vmem:[#allocation3 + $0x48] sm:$0xff]
        %v136 = vld [vmem:[#allocation3 + $0x50] sm:$0xff]
        %v137 = vld [vmem:[#allocation3 + $0x58] sm:$0xff]
        %v138 = vld [vmem:[#allocation3 + $0x60] sm:$0xff]
        %v139 = vld [vmem:[#allocation3 + $0x68] sm:$0xff]
        %v140 = vld [vmem:[#allocation3 + $0x70] sm:$0xff]
        %v141 = vld [vmem:[#allocation3 + $0x78] sm:$0xff]
        %v142 = vmul.f32 %v126, 0.1
        %v143 = vmul.f32 %v127, 0.1
        %v144 = vmul.f32 %v128, 0.1
        %v145 = vmul.f32 %v129, 0.1
        %v146 = vmul.f32 %v130, 0.1
        %v147 = vmul.f32 %v131, 0.1
        %v148 = vmul.f32 %v132, 0.1
        %v149 = vmul.f32 %v133, 0.1
        %v150 = vmul.f32 %v134, 0.1
        %v151 = vmul.f32 %v135, 0.1
        %v152 = vmul.f32 %v136, 0.1
        %v153 = vmul.f32 %v137, 0.1
        %v154 = vmul.f32 %v138, 0.1
        %v155 = vmul.f32 %v139, 0.1
        %v156 = vmul.f32 %v140, 0.1
        %v157 = vmul.f32 %v141, 0.1
        %158 = vst [vmem:[#allocation4] sm:$0xff] %v142
        %159 = vst [vmem:[#allocation4 + $0x8] sm:$0xff] %v143
        %160 = vst [vmem:[#allocation4 + $0x10] sm:$0xff] %v144
        %161 = vst [vmem:[#allocation4 + $0x18] sm:$0xff] %v145
        %162 = vst [vmem:[#allocation4 + $0x20] sm:$0xff] %v146
        %163 = vst [vmem:[#allocation4 + $0x28] sm:$0xff] %v147
        %164 = vst [vmem:[#allocation4 + $0x30] sm:$0xff] %v148
        %165 = vst [vmem:[#allocation4 + $0x38] sm:$0xff] %v149
        %166 = vst [vmem:[#allocation4 + $0x40] sm:$0xff] %v150
        %167 = vst [vmem:[#allocation4 + $0x48] sm:$0xff] %v151
        %168 = vst [vmem:[#allocation4 + $0x50] sm:$0xff] %v152
        %169 = vst [vmem:[#allocation4 + $0x58] sm:$0xff] %v153
        %170 = vst [vmem:[#allocation4 + $0x60] sm:$0xff] %v154
        %171 = vst [vmem:[#allocation4 + $0x68] sm:$0xff] %v155
        %172 = vst [vmem:[#allocation4 + $0x70] sm:$0xff] %v156
        %173 = vst [vmem:[#allocation4 + $0x78] sm:$0xff] %v157
      $region16: #{appnp_forward.1} parent=11 // pred_fallthru
        _
      %p174 = scmp.lt.s32.totalorder %s8, 0
      %s175 = ssub.s32 0, %s8
      %s176 = scalar_select %p174, %s175, %s8
      %s177 = sand.u32 %s176, 1
      %s178 = ssub.s32 0, %s177
      %s179 = scalar_select %p174, %s178, %s177
      %p180 = scmp.ne.s32.totalorder %s179, 0
      %p181 = scmp.lt.s32.totalorder %s179, 0
      %p182 = pnand %p181, %p180
      %p183 = pneg %p182
      %s184 = sadd.s32 %s179, 2
      %s185 = scalar_select %p183, %s184, %s179
      %p186 = scmp.eq.s32.totalorder %s185, 0
      %p187 = scmp.lt.s32.totalorder %s8, 9
      %v188 = vld [vmem:[#allocation3] sm:$0xff]
      %v189 = vld [vmem:[#allocation3 + $0x8] sm:$0xff]
      %v190 = vld [vmem:[#allocation3 + $0x10] sm:$0xff]
      %v191 = vld [vmem:[#allocation3 + $0x18] sm:$0xff]
      %v192 = vld [vmem:[#allocation3 + $0x20] sm:$0xff]
      %v193 = vld [vmem:[#allocation3 + $0x28] sm:$0xff]
      %v194 = vld [vmem:[#allocation3 + $0x30] sm:$0xff]
      %v195 = vld [vmem:[#allocation3 + $0x38] sm:$0xff]
      %v196 = vld [vmem:[#allocation3 + $0x40] sm:$0xff]
      %v197 = vld [vmem:[#allocation3 + $0x48] sm:$0xff]
      %v198 = vld [vmem:[#allocation3 + $0x50] sm:$0xff]
      %v199 = vld [vmem:[#allocation3 + $0x58] sm:$0xff]
      %v200 = vld [vmem:[#allocation3 + $0x60] sm:$0xff]
      %v201 = vld [vmem:[#allocation3 + $0x68] sm:$0xff]
      %v202 = vld [vmem:[#allocation3 + $0x70] sm:$0xff]
      %v203 = vld [vmem:[#allocation3 + $0x78] sm:$0xff]
      %s204 = scalar_lea.vmem [#allocation3], 128
      %v205 = vld [vmem:[%s204] sm:$0xff]
      %v206 = vld [vmem:[%s204 + $0x8] sm:$0xff]
      %v207 = vld [vmem:[%s204 + $0x10] sm:$0xff]
      %v208 = vld [vmem:[%s204 + $0x18] sm:$0xff]
      %v209 = vld [vmem:[%s204 + $0x20] sm:$0xff]
      %v210 = vld [vmem:[%s204 + $0x28] sm:$0xff]
      %v211 = vld [vmem:[%s204 + $0x30] sm:$0xff]
      %v212 = vld [vmem:[%s204 + $0x38] sm:$0xff]
      %v213 = vld [vmem:[%s204 + $0x40] sm:$0xff]
      %v214 = vld [vmem:[%s204 + $0x48] sm:$0xff]
      %v215 = vld [vmem:[%s204 + $0x50] sm:$0xff]
      %v216 = vld [vmem:[%s204 + $0x58] sm:$0xff]
      %v217 = vld [vmem:[%s204 + $0x60] sm:$0xff]
      %v218 = vld [vmem:[%s204 + $0x68] sm:$0xff]
      %v219 = vld [vmem:[%s204 + $0x70] sm:$0xff]
      %v220 = vld [vmem:[%s204 + $0x78] sm:$0xff]
      %s221 = scalar_select %p186, 1, 0
      %v222 = vstv %s221
      %vm223 = vcmp.eq.s32.totalorder %v222, 1
      %v224 = vsel %vm223, %v188, %v205
      %v225 = vsel %vm223, %v189, %v206
      %v226 = vsel %vm223, %v190, %v207
      %v227 = vsel %vm223, %v191, %v208
      %v228 = vsel %vm223, %v192, %v209
      %v229 = vsel %vm223, %v193, %v210
      %v230 = vsel %vm223, %v194, %v211
      %v231 = vsel %vm223, %v195, %v212
      %v232 = vsel %vm223, %v196, %v213
      %v233 = vsel %vm223, %v197, %v214
      %v234 = vsel %vm223, %v198, %v215
      %v235 = vsel %vm223, %v199, %v216
      %v236 = vsel %vm223, %v200, %v217
      %v237 = vsel %vm223, %v201, %v218
      %v238 = vsel %vm223, %v202, %v219
      %v239 = vsel %vm223, %v203, %v220
      %v240 = vpack.c.bf16 %v225, %v224
      %v241 = vpack.c.bf16 %v227, %v226
      %v242 = vpack.c.bf16 %v229, %v228
      %v243 = vpack.c.bf16 %v231, %v230
      %v244 = vpack.c.bf16 %v233, %v232
      %v245 = vpack.c.bf16 %v235, %v234
      %v246 = vpack.c.bf16 %v237, %v236
      %v247 = vpack.c.bf16 %v239, %v238
      %v248 = vld [vmem:[#allocation2] sm:$0xf]
      %v249 = vld [vmem:[#allocation2 + $0x4] sm:$0xf]
      %v250 = vld [vmem:[#allocation2 + $0x8] sm:$0xf]
      %v251 = vld [vmem:[#allocation2 + $0xc] sm:$0xf]
      %v252 = vld [vmem:[#allocation2 + $0x10] sm:$0xf]
      %v253 = vld [vmem:[#allocation2 + $0x14] sm:$0xf]
      %v254 = vld [vmem:[#allocation2 + $0x18] sm:$0xf]
      %v255 = vld [vmem:[#allocation2 + $0x1c] sm:$0xf]
      %v256 = vld [vmem:[#allocation2 + $0x20] sm:$0xf]
      %v257 = vld [vmem:[#allocation2 + $0x24] sm:$0xf]
      %v258 = vld [vmem:[#allocation2 + $0x28] sm:$0xf]
      %v259 = vld [vmem:[#allocation2 + $0x2c] sm:$0xf]
      %v260 = vld [vmem:[#allocation2 + $0x30] sm:$0xf]
      %v261 = vld [vmem:[#allocation2 + $0x34] sm:$0xf]
      %v262 = vld [vmem:[#allocation2 + $0x38] sm:$0xf]
      %v263 = vld [vmem:[#allocation2 + $0x3c] sm:$0xf]
      %v264 = vld [vmem:[#allocation4] sm:$0xff]
      %v265 = vld [vmem:[#allocation4 + $0x8] sm:$0xff]
      %v266 = vld [vmem:[#allocation4 + $0x10] sm:$0xff]
      %v267 = vld [vmem:[#allocation4 + $0x18] sm:$0xff]
      %v268 = vld [vmem:[#allocation4 + $0x20] sm:$0xff]
      %v269 = vld [vmem:[#allocation4 + $0x28] sm:$0xff]
      %v270 = vld [vmem:[#allocation4 + $0x30] sm:$0xff]
      %v271 = vld [vmem:[#allocation4 + $0x38] sm:$0xff]
      %v272 = vld [vmem:[#allocation4 + $0x40] sm:$0xff]
      %v273 = vld [vmem:[#allocation4 + $0x48] sm:$0xff]
      %v274 = vld [vmem:[#allocation4 + $0x50] sm:$0xff]
      %v275 = vld [vmem:[#allocation4 + $0x58] sm:$0xff]
      %v276 = vld [vmem:[#allocation4 + $0x60] sm:$0xff]
      %v277 = vld [vmem:[#allocation4 + $0x68] sm:$0xff]
      %v278 = vld [vmem:[#allocation4 + $0x70] sm:$0xff]
      %v279 = vld [vmem:[#allocation4 + $0x78] sm:$0xff]
      %v296 = vunpack.c.l.b16 %v248
      %v297 = vunpack.c.l.b16 %v249
      %v298 = vunpack.c.l.b16 %v250
      %v299 = vunpack.c.l.b16 %v251
      %v300 = vunpack.c.l.b16 %v252
      %v301 = vunpack.c.l.b16 %v253
      %v302 = vunpack.c.l.b16 %v254
      %v303 = vunpack.c.l.b16 %v255
      %v304 = vunpack.c.l.b16 %v256
      %v305 = vunpack.c.l.b16 %v257
      %v306 = vunpack.c.l.b16 %v258
      %v307 = vunpack.c.l.b16 %v259
      %v308 = vunpack.c.l.b16 %v260
      %v309 = vunpack.c.l.b16 %v261
      %v310 = vunpack.c.l.b16 %v262
      %v311 = vunpack.c.l.b16 %v263
      %v312 = vpack.c.b16 %v297, %v296
      %v313 = vpack.c.b16 %v299, %v298
      %v314 = vpack.c.b16 %v301, %v300
      %v315 = vpack.c.b16 %v303, %v302
      %v316 = vpack.c.b16 %v305, %v304
      %v317 = vpack.c.b16 %v307, %v306
      %v318 = vpack.c.b16 %v309, %v308
      %v319 = vpack.c.b16 %v311, %v310
      %328 = vmatpush.bf16.msra.mxu0 %v247
      %329 = vmatpush.bf16.msra.mxu0 %v246
      %330 = vmatpush.bf16.msra.mxu0 %v245
      %331 = vmatpush.bf16.msra.mxu0 %v244
      %332 = vmatpush.bf16.msra.mxu0 %v243
      %333 = vmatpush.bf16.msra.mxu0 %v242
      %334 = vmatpush.bf16.msra.mxu0 %v241
      %335 = vmatpush.bf16.msra.mxu0 %v240
      %336 = vmatmul.bf16.gmra.mxu0 %v312
      %v337 = vpop.f32.mrf.mxu0
      %v338 = vadd.f32 %v264, %v337
      %v339 = vpop.f32.mrf.mxu0
      %v340 = vadd.f32 %v265, %v339
      %341 = vmatmul.bf16.gmra.mxu0 %v313
      %v342 = vpop.f32.mrf.mxu0
      %v343 = vadd.f32 %v266, %v342
      %v344 = vpop.f32.mrf.mxu0
      %v345 = vadd.f32 %v267, %v344
      %346 = vmatmul.bf16.gmra.mxu0 %v314
      %v347 = vpop.f32.mrf.mxu0
      %v348 = vadd.f32 %v268, %v347
      %v349 = vpop.f32.mrf.mxu0
      %v350 = vadd.f32 %v269, %v349
      %351 = vmatmul.bf16.gmra.mxu0 %v315
      %v352 = vpop.f32.mrf.mxu0
      %v353 = vadd.f32 %v270, %v352
      %v354 = vpop.f32.mrf.mxu0
      %v355 = vadd.f32 %v271, %v354
      %356 = vmatmul.bf16.gmra.mxu0 %v316
      %v357 = vpop.f32.mrf.mxu0
      %v358 = vadd.f32 %v272, %v357
      %v359 = vpop.f32.mrf.mxu0
      %v360 = vadd.f32 %v273, %v359
      %361 = vmatmul.bf16.gmra.mxu0 %v317
      %v362 = vpop.f32.mrf.mxu0
      %v363 = vadd.f32 %v274, %v362
      %v364 = vpop.f32.mrf.mxu0
      %v365 = vadd.f32 %v275, %v364
      %366 = vmatmul.bf16.gmra.mxu0 %v318
      %v367 = vpop.f32.mrf.mxu0
      %v368 = vadd.f32 %v276, %v367
      %v369 = vpop.f32.mrf.mxu0
      %v370 = vadd.f32 %v277, %v369
      %371 = vmatmul.bf16.gmra.mxu0 %v319
      %v372 = vpop.f32.mrf.mxu0
      %v373 = vadd.f32 %v278, %v372
      %v374 = vpop.f32.mrf.mxu0
      %v375 = vadd.f32 %v279, %v374
      %376 = vdwg.mxu0
      %p377 = pnand %p187, %p186
      %p378 = pneg %p377
      // Predicated region
      $region57: #{appnp_forward.1} parent=11 // pred_check
        _
      $region58: #{appnp_forward.1} parent=11 // pred_check_branch
        %380 = sbr.rel (%p377) target = $region60
      $region59: #{appnp_forward.1} parent=11 // pred_region
        %381 = vst [vmem:[%s204] sm:$0xff] %v338
        %382 = vst [vmem:[%s204 + $0x8] sm:$0xff] %v340
        %383 = vst [vmem:[%s204 + $0x10] sm:$0xff] %v343
        %384 = vst [vmem:[%s204 + $0x18] sm:$0xff] %v345
        %385 = vst [vmem:[%s204 + $0x20] sm:$0xff] %v348
        %386 = vst [vmem:[%s204 + $0x28] sm:$0xff] %v350
        %387 = vst [vmem:[%s204 + $0x30] sm:$0xff] %v353
        %388 = vst [vmem:[%s204 + $0x38] sm:$0xff] %v355
        %389 = vst [vmem:[%s204 + $0x40] sm:$0xff] %v358
        %390 = vst [vmem:[%s204 + $0x48] sm:$0xff] %v360
        %391 = vst [vmem:[%s204 + $0x50] sm:$0xff] %v363
        %392 = vst [vmem:[%s204 + $0x58] sm:$0xff] %v365
        %393 = vst [vmem:[%s204 + $0x60] sm:$0xff] %v368
        %394 = vst [vmem:[%s204 + $0x68] sm:$0xff] %v370
        %395 = vst [vmem:[%s204 + $0x70] sm:$0xff] %v373
        %396 = vst [vmem:[%s204 + $0x78] sm:$0xff] %v375
      $region60: #{appnp_forward.1} parent=11 // pred_fallthru
        _
      %p397 = scmp.ne.s32.totalorder %s185, 0
      %p398 = pnand %p187, %p397
      %p399 = pneg %p398
      // Predicated region
      $region61: #{appnp_forward.1} parent=11 // pred_check
        _
      $region62: #{appnp_forward.1} parent=11 // pred_check_branch
        %401 = sbr.rel (%p398) target = $region64
      $region63: #{appnp_forward.1} parent=11 // pred_region
        %402 = vst [vmem:[#allocation3] sm:$0xff] %v338
        %403 = vst [vmem:[#allocation3 + $0x8] sm:$0xff] %v340
        %404 = vst [vmem:[#allocation3 + $0x10] sm:$0xff] %v343
        %405 = vst [vmem:[#allocation3 + $0x18] sm:$0xff] %v345
        %406 = vst [vmem:[#allocation3 + $0x20] sm:$0xff] %v348
        %407 = vst [vmem:[#allocation3 + $0x28] sm:$0xff] %v350
        %408 = vst [vmem:[#allocation3 + $0x30] sm:$0xff] %v353
        %409 = vst [vmem:[#allocation3 + $0x38] sm:$0xff] %v355
        %410 = vst [vmem:[#allocation3 + $0x40] sm:$0xff] %v358
        %411 = vst [vmem:[#allocation3 + $0x48] sm:$0xff] %v360
        %412 = vst [vmem:[#allocation3 + $0x50] sm:$0xff] %v363
        %413 = vst [vmem:[#allocation3 + $0x58] sm:$0xff] %v365
        %414 = vst [vmem:[#allocation3 + $0x60] sm:$0xff] %v368
        %415 = vst [vmem:[#allocation3 + $0x68] sm:$0xff] %v370
        %416 = vst [vmem:[#allocation3 + $0x70] sm:$0xff] %v373
        %417 = vst [vmem:[#allocation3 + $0x78] sm:$0xff] %v375
      $region64: #{appnp_forward.1} parent=11 // pred_fallthru
        _
      %p418 = scmp.eq.s32.totalorder %s8, 9
      // Predicated region
      $region65: #{appnp_forward.1} parent=11 // pred_check
        %p419 = pneg %p418
      $region66: #{appnp_forward.1} parent=11 // pred_check_branch
        %421 = sbr.rel (%p419) target = $region68
      $region67: #{appnp_forward.1} parent=11 // pred_region
        %v422 = vmax.f32 %v338, 0.0
        %v423 = vmax.f32 %v340, 0.0
        %v424 = vmax.f32 %v343, 0.0
        %v425 = vmax.f32 %v345, 0.0
        %v426 = vmax.f32 %v348, 0.0
        %v427 = vmax.f32 %v350, 0.0
        %v428 = vmax.f32 %v353, 0.0
        %v429 = vmax.f32 %v355, 0.0
        %v430 = vmax.f32 %v358, 0.0
        %v431 = vmax.f32 %v360, 0.0
        %v432 = vmax.f32 %v363, 0.0
        %v433 = vmax.f32 %v365, 0.0
        %v434 = vmax.f32 %v368, 0.0
        %v435 = vmax.f32 %v370, 0.0
        %v436 = vmax.f32 %v373, 0.0
        %v437 = vmax.f32 %v375, 0.0
        %438 = vst [vmem:[%s2] sm:$0xff] %v422
        %439 = vst [vmem:[%s2 + $0x8] sm:$0xff] %v423
        %440 = vst [vmem:[%s2 + $0x10] sm:$0xff] %v424
        %441 = vst [vmem:[%s2 + $0x18] sm:$0xff] %v425
        %442 = vst [vmem:[%s2 + $0x20] sm:$0xff] %v426
        %443 = vst [vmem:[%s2 + $0x28] sm:$0xff] %v427
        %444 = vst [vmem:[%s2 + $0x30] sm:$0xff] %v428
        %445 = vst [vmem:[%s2 + $0x38] sm:$0xff] %v429
        %446 = vst [vmem:[%s2 + $0x40] sm:$0xff] %v430
        %447 = vst [vmem:[%s2 + $0x48] sm:$0xff] %v431
        %448 = vst [vmem:[%s2 + $0x50] sm:$0xff] %v432
        %449 = vst [vmem:[%s2 + $0x58] sm:$0xff] %v433
        %450 = vst [vmem:[%s2 + $0x60] sm:$0xff] %v434
        %451 = vst [vmem:[%s2 + $0x68] sm:$0xff] %v435
        %452 = vst [vmem:[%s2 + $0x70] sm:$0xff] %v436
        %453 = vst [vmem:[%s2 + $0x78] sm:$0xff] %v437
      $region68: #{appnp_forward.1} parent=11 // pred_fallthru
        _
      // Predicated region
      $region69: #{appnp_forward.1} parent=11 // pred_check
        %p454 = pneg %p18
      $region70: #{appnp_forward.1} parent=11 // pred_check_branch
        %456 = sbr.rel (%p454) target = $region72
      $region71: #{appnp_forward.1} parent=11 // pred_region
        _
      $region72: #{appnp_forward.1} parent=11 // pred_fallthru
        _
      // Predicated region
      $region73: #{appnp_forward.1} parent=11 // pred_check
        %p457 = pneg %p18
      $region74: #{appnp_forward.1} parent=11 // pred_check_branch
        %459 = sbr.rel (%p457) target = $region76
      $region75: #{appnp_forward.1} parent=11 // pred_region
        _
      $region76: #{appnp_forward.1} parent=11 // pred_fallthru
        _
    $region12: #{appnp_forward.1} parent=5 // pred_fallthru
      _
    %p460 = scmp.le.s32.totalorder 1, %s8
    // Predicated region
    $region77: #{appnp_forward.1} parent=5 // pred_check
      %p461 = pneg %p460
    $region78: #{appnp_forward.1} parent=5 // pred_check_branch
      %463 = sbr.rel (%p461) target = $region80
    $region79: #{appnp_forward.1} parent=5 // pred_region
      %s464 = ssub.s32 %s8, 1
    $region80: #{appnp_forward.1} parent=5 // pred_fallthru
      _
  $region6: #{appnp_forward.1} parent=0 // loop_footer
    %s12 = sadd.s32 1, %s8
  $region7: #{appnp_forward.1} parent=0 // loop_footer_branch
    %7 = sbr.rel target = $region3
  $region8: #{appnp_forward.1} parent=0 // loop_exit
    _

</llo_original>
